<compile_context>
chip_gen: v6e
topology: v6e:2x2x1
jax: 0.10.0
libtpu: 0.0.40
codegen_flags: <defaults>
</compile_context>

<pallas_src>
import jax
import jax.numpy as jnp
from jax.experimental import pallas as pl
from jax.experimental.pallas import tpu as pltpu


# ---------------------------------------------------------------------------
# Adjacency preprocessing (edge MLP + softmax + top-k mask + re-normalize).
# Data-dependent top-k/scatter -> plain JAX.
# ---------------------------------------------------------------------------
def _adjacency(adj_feat, mlp_weights, num_graphs, k):
    h = adj_feat
    n_layers = len(mlp_weights)
    for i, (W, b) in enumerate(mlp_weights):
        h = h @ W + b
        if i != n_layers - 1:
            h = jnp.maximum(h, 0.0)
    # h: (N, N, num_graphs)
    N = h.shape[0]
    adjs = []
    for g in range(num_graphs):
        adj = jax.nn.softmax(h[:, :, g], axis=1)
        _, idx = jax.lax.top_k(adj, k)                      # (N, k) per-row top-k
        mask = jnp.zeros((N, N), adj.dtype).at[
            jnp.arange(N)[:, None], idx].set(1.0)           # scatter_(1, t1, 1)
        adj = adj * mask
        adj = adj * (1.0 / (adj.sum(axis=1, keepdims=True) + 1e-8))
        adjs.append(adj)
    return jnp.stack(adjs, axis=0)                          # (G, N, N)


# ---------------------------------------------------------------------------
# Pallas kernel: relu -> graph diffusion -> fused (concat + 1x1 conv + BN).
# ---------------------------------------------------------------------------
def _make_sgc_kernel(num_graphs, order, alpha, C, T):
    CT = C * T
    alpha = float(alpha)
    one_minus_alpha = 1.0 - alpha

    def kernel(x_ref, adjt_ref, w_ref, shift_ref, out_ref):
        # x_ref block: (1, N, C*T) -> one batch element per grid step.
        x = jnp.maximum(x_ref[0], 0.0)                      # relu, (N, C*T)
        adjt = adjt_ref[...]                                # (G, N, N), A^T per graph

        # Block 0 of the channel concat: x itself.
        acc = jnp.dot(x, w_ref[pl.ds(0, CT), :],
                      preferred_element_type=jnp.float32)   # (N, O*T)

        blk = 1
        for g in range(num_graphs):                         # static python loops:
            a_t = adjt[g]                                    #   fully unrolled, all
            y = x                                            #   slices static
            for _ in range(order):
                # gconv(y, A) in (N, C*T) layout == A^T @ Y  (MXU matmul)
                y = alpha * x + one_minus_alpha * jnp.dot(
                    a_t, y, preferred_element_type=jnp.float32)
                acc = acc + jnp.dot(
                    y, w_ref[pl.ds(blk * CT, CT), :],
                    preferred_element_type=jnp.float32)
                blk += 1

        # + conv bias / BN shift (folded); lane-dense (N, O*T) store.
        out_ref[0] = (acc + shift_ref[...]).astype(out_ref.dtype)

    return kernel


# ---------------------------------------------------------------------------
# Wrapper.
# ---------------------------------------------------------------------------
def spatial_graph_conv(x, adj_feat, mlp_weights, W1, b1,
                       bn_gamma, bn_beta, bn_mean, bn_var, *,
                       num_graphs, order, k, alpha, bn_eps=1e-5):
    """x: (B, C, N, T) f32.  adj_feat: (N, N, H_in).  W1: (O, C*(G*order+1)).
    Returns (B, O, N, T), matching SpatialGraphConv.forward (eval mode)."""
    B, C, N, T = x.shape
    O = W1.shape[0]
    C_total = C * (num_graphs * order + 1)
    CT, OT = C * T, O * T

    # --- adjacency preprocessing (plain JAX: data-dependent top-k) ---
    adjs = _adjacency(adj_feat, mlp_weights, num_graphs, k)      # (G, N, N)
    adjs_t = jnp.transpose(adjs, (0, 2, 1)).astype(jnp.float32)  # A^T per graph

    # --- fold 1x1 conv + conv bias + eval BatchNorm into one weight + shift ---
    scale = bn_gamma / jnp.sqrt(bn_var + bn_eps)                 # (O,)
    W_scaled = (W1 * scale[:, None]).astype(jnp.float32)         # (O, C_total)
    eyeT = jnp.eye(T, dtype=jnp.float32)
    # W_big[c'*T + t, o*T + s] = W_scaled[o, c'] * (t == s)
    W_big = jnp.einsum('oc,ts->ctos', W_scaled, eyeT).reshape(C_total * T, OT)
    shift = bn_beta + (b1 - bn_mean) * scale                     # (O,)
    shift_row = jnp.repeat(shift, T).reshape(1, OT).astype(jnp.float32)

    # --- lane-friendly input layout: (B, N, C*T) ---
    x_p = jnp.transpose(x, (0, 2, 1, 3)).reshape(B, N, CT).astype(jnp.float32)

    out2 = pl.pallas_call(
        _make_sgc_kernel(num_graphs, order, alpha, C, T),
        out_shape=jax.ShapeDtypeStruct((B, N, OT), jnp.float32),
        grid_spec=pltpu.PrefetchScalarGridSpec(
            num_scalar_prefetch=0,
            grid=(B,),
            in_specs=[
                pl.BlockSpec((1, N, CT), lambda b: (b, 0, 0)),
                pl.BlockSpec((num_graphs, N, N), lambda b: (0, 0, 0)),
                pl.BlockSpec((C_total * T, OT), lambda b: (0, 0)),
                pl.BlockSpec((1, OT), lambda b: (0, 0)),
            ],
            out_specs=pl.BlockSpec((1, N, OT), lambda b: (b, 0, 0)),
        ),
        compiler_params=pltpu.CompilerParams(
            dimension_semantics=("parallel",)),
    )(x_p, adjs_t, W_big, shift_row)

    # (B, N, O*T) -> (B, O, N, T)
    return jnp.transpose(out2.reshape(B, N, O, T), (0, 2, 1, 3))


# ---------------------------------------------------------------------------
# Pure-JAX reference (mirrors the PyTorch forward, eval mode).
# ---------------------------------------------------------------------------
def _reference(x, adj_feat, mlp_weights, W1, b1,
               bn_gamma, bn_beta, bn_mean, bn_var, *,
               num_graphs, order, k, alpha, bn_eps=1e-5):
    adjs = _adjacency(adj_feat, mlp_weights, num_graphs, k)
    xr = jnp.maximum(x, 0.0)
    outs = [xr]
    for i in range(num_graphs):
        y = xr
        for _ in range(order):
            # gconv: einsum('ncvl,vw->ncwl')
            y = alpha * xr + (1.0 - alpha) * jnp.einsum('bcvt,vw->bcwt', y, adjs[i])
            outs.append(y)
    x1 = jnp.concatenate(outs, axis=1)                           # (B, C_total, N, T)
    z = jnp.einsum('oc,bcnt->bont', W1, x1) + b1[None, :, None, None]
    z = (z - bn_mean[None, :, None, None]) / jnp.sqrt(
        bn_var[None, :, None, None] + bn_eps)
    z = z * bn_gamma[None, :, None, None] + bn_beta[None, :, None, None]
    return z                                                     # dropout eval = identity


if __name__ == "__main__":
    # Small shapes consistent with the module:
    #   batch B=2, in_channels C=4, out_channels O=16, num_nodes N=16, length T=8,
    #   input_graph_hidden=32, graph_hiddens=[16], num_graphs=2, order=2, k=8.
    B, C, O, N, T = 2, 4, 16, 16, 8
    H_in, graph_hiddens = 32, [16]
    num_graphs, order, k_top, alpha = 2, 2, 8, 0.05

    key = jax.random.PRNGKey(0)
    keys = jax.random.split(key, 12)

    x = jax.random.normal(keys[0], (B, C, N, T), dtype=jnp.float32)
    adj_feat = jax.random.normal(keys[1], (N, N, H_in), dtype=jnp.float32)

    # Edge MLP: Linear(32->16), ReLU, Linear(16->num_graphs). Weights stored (in, out).
    dims = [H_in] + graph_hiddens + [num_graphs]
    mlp_weights = []
    for i in range(len(dims) - 1):
        Wm = jax.random.normal(keys[2 + 2 * i], (dims[i], dims[i + 1]), jnp.float32) * 0.2
        bm = jax.random.normal(keys[3 + 2 * i], (dims[i + 1],), jnp.float32) * 0.1
        mlp_weights.append((Wm, bm))

    C_total = C * (num_graphs * order + 1)
    W1 = jax.random.normal(keys[6], (O, C_total), jnp.float32) * 0.1   # 1x1 conv weight
    b1 = jax.random.normal(keys[7], (O,), jnp.float32) * 0.1
    bn_gamma = 1.0 + 0.1 * jax.random.normal(keys[8], (O,), jnp.float32)
    bn_beta = 0.1 * jax.random.normal(keys[9], (O,), jnp.float32)
    bn_mean = 0.1 * jax.random.normal(keys[10], (O,), jnp.float32)
    bn_var = jnp.abs(1.0 + 0.1 * jax.random.normal(keys[11], (O,), jnp.float32))

    out = spatial_graph_conv(
        x, adj_feat, mlp_weights, W1, b1, bn_gamma, bn_beta, bn_mean, bn_var,
        num_graphs=num_graphs, order=order, k=k_top, alpha=alpha)
    out = jax.block_until_ready(out)

    ref = _reference(
        x, adj_feat, mlp_weights, W1, b1, bn_gamma, bn_beta, bn_mean, bn_var,
        num_graphs=num_graphs, order=order, k=k_top, alpha=alpha)

    assert out.shape == (B, O, N, T)
    max_err = float(jnp.max(jnp.abs(out - ref)))
    assert jnp.allclose(out, ref, atol=1e-4, rtol=1e-4), max_err

    print("KERNEL_OK")
</pallas_src>

<mosaic_0001>
module attributes {stable_mosaic.version = 11 : i64} {
  func.func @kernel(%arg0: i32, %arg1: memref<1x16x32xf32, #tpu.memory_space<vmem>>, %arg2: memref<2x16x16xf32, #tpu.memory_space<vmem>>, %arg3: memref<160x128xf32, #tpu.memory_space<vmem>>, %arg4: memref<1x128xf32, #tpu.memory_space<vmem>>, %arg5: memref<1x16x128xf32, #tpu.memory_space<vmem>>) attributes {dimension_semantics = [#tpu.dimension_semantics<parallel>], iteration_bounds = array<i64: 2>, scalar_prefetch = 0 : i64, scratch_operands = 0 : i64, tpu.core_type = #tpu.core_type<tc>, window_params = [{transform_indices = @transform_0, window_bounds = array<i64: 1, 16, 32>}, {pipeline_mode = #tpu.pipeline_mode<synchronous>, transform_indices = @transform_1, window_bounds = array<i64: 2, 16, 16>}, {pipeline_mode = #tpu.pipeline_mode<synchronous>, transform_indices = @transform_2, window_bounds = array<i64: 160, 128>}, {pipeline_mode = #tpu.pipeline_mode<synchronous>, transform_indices = @transform_3, window_bounds = array<i64: 1, 128>}, {transform_indices = @transform_4, window_bounds = array<i64: 1, 16, 128>}]} {
    %c0 = arith.constant 0 : index
    %c0_0 = arith.constant 0 : index
    %c0_1 = arith.constant 0 : index
    %0 = vector.load %arg1[%c0, %c0_0, %c0_1] : memref<1x16x32xf32, #tpu.memory_space<vmem>>, vector<1x16x32xf32>
    %1 = vector.shape_cast %0 : vector<1x16x32xf32> to vector<16x32xf32>
    %cst = arith.constant 0.000000e+00 : f32
    %2 = vector.broadcast %cst : f32 to vector<16x32xf32>
    %3 = arith.maximumf %1, %2 : vector<16x32xf32>
    %c0_2 = arith.constant 0 : index
    %c0_3 = arith.constant 0 : index
    %c0_4 = arith.constant 0 : index
    %4 = vector.load %arg2[%c0_2, %c0_3, %c0_4] : memref<2x16x16xf32, #tpu.memory_space<vmem>>, vector<2x16x16xf32>
    %c0_5 = arith.constant 0 : index
    %c0_6 = arith.constant 0 : index
    %5 = vector.load %arg3[%c0_5, %c0_6] : memref<160x128xf32, #tpu.memory_space<vmem>>, vector<32x128xf32>
    %cst_7 = arith.constant dense<0.000000e+00> : vector<16x128xf32>
    %6 = tpu.matmul %3, %5, %cst_7 {dimension_numbers = #tpu.dot_dimension_numbers<[1], [0], [0], [1], [0, 0, 1, 1], [], []>} : vector<16x32xf32>, vector<32x128xf32>, vector<16x128xf32> -> vector<16x128xf32>
    %7 = vector.extract_strided_slice %4 {offsets = [0, 0, 0], sizes = [1, 16, 16], strides = [1, 1, 1]} : vector<2x16x16xf32> to vector<1x16x16xf32>
    %8 = vector.shape_cast %7 : vector<1x16x16xf32> to vector<16x16xf32>
    %cst_8 = arith.constant 5.000000e-02 : f32
    %9 = vector.broadcast %cst_8 : f32 to vector<16x32xf32>
    %10 = arith.mulf %9, %3 : vector<16x32xf32>
    %cst_9 = arith.constant dense<0.000000e+00> : vector<16x32xf32>
    %11 = tpu.matmul %8, %3, %cst_9 {dimension_numbers = #tpu.dot_dimension_numbers<[1], [0], [0], [1], [0, 0, 1, 1], [], []>} : vector<16x16xf32>, vector<16x32xf32>, vector<16x32xf32> -> vector<16x32xf32>
    %cst_10 = arith.constant 0.949999988 : f32
    %12 = vector.broadcast %cst_10 : f32 to vector<16x32xf32>
    %13 = arith.mulf %12, %11 : vector<16x32xf32>
    %14 = arith.addf %10, %13 : vector<16x32xf32>
    %c32 = arith.constant 32 : index
    %c0_11 = arith.constant 0 : index
    %15 = vector.load %arg3[%c32, %c0_11] : memref<160x128xf32, #tpu.memory_space<vmem>>, vector<32x128xf32>
    %cst_12 = arith.constant dense<0.000000e+00> : vector<16x128xf32>
    %16 = tpu.matmul %14, %15, %cst_12 {dimension_numbers = #tpu.dot_dimension_numbers<[1], [0], [0], [1], [0, 0, 1, 1], [], []>} : vector<16x32xf32>, vector<32x128xf32>, vector<16x128xf32> -> vector<16x128xf32>
    %17 = arith.addf %6, %16 : vector<16x128xf32>
    %cst_13 = arith.constant 5.000000e-02 : f32
    %18 = vector.broadcast %cst_13 : f32 to vector<16x32xf32>
    %19 = arith.mulf %18, %3 : vector<16x32xf32>
    %cst_14 = arith.constant dense<0.000000e+00> : vector<16x32xf32>
    %20 = tpu.matmul %8, %14, %cst_14 {dimension_numbers = #tpu.dot_dimension_numbers<[1], [0], [0], [1], [0, 0, 1, 1], [], []>} : vector<16x16xf32>, vector<16x32xf32>, vector<16x32xf32> -> vector<16x32xf32>
    %cst_15 = arith.constant 0.949999988 : f32
    %21 = vector.broadcast %cst_15 : f32 to vector<16x32xf32>
    %22 = arith.mulf %21, %20 : vector<16x32xf32>
    %23 = arith.addf %19, %22 : vector<16x32xf32>
    %c64 = arith.constant 64 : index
    %c0_16 = arith.constant 0 : index
    %24 = vector.load %arg3[%c64, %c0_16] : memref<160x128xf32, #tpu.memory_space<vmem>>, vector<32x128xf32>
    %cst_17 = arith.constant dense<0.000000e+00> : vector<16x128xf32>
    %25 = tpu.matmul %23, %24, %cst_17 {dimension_numbers = #tpu.dot_dimension_numbers<[1], [0], [0], [1], [0, 0, 1, 1], [], []>} : vector<16x32xf32>, vector<32x128xf32>, vector<16x128xf32> -> vector<16x128xf32>
    %26 = arith.addf %17, %25 : vector<16x128xf32>
    %27 = vector.extract_strided_slice %4 {offsets = [1, 0, 0], sizes = [1, 16, 16], strides = [1, 1, 1]} : vector<2x16x16xf32> to vector<1x16x16xf32>
    %28 = vector.shape_cast %27 : vector<1x16x16xf32> to vector<16x16xf32>
    %cst_18 = arith.constant 5.000000e-02 : f32
    %29 = vector.broadcast %cst_18 : f32 to vector<16x32xf32>
    %30 = arith.mulf %29, %3 : vector<16x32xf32>
    %cst_19 = arith.constant dense<0.000000e+00> : vector<16x32xf32>
    %31 = tpu.matmul %28, %3, %cst_19 {dimension_numbers = #tpu.dot_dimension_numbers<[1], [0], [0], [1], [0, 0, 1, 1], [], []>} : vector<16x16xf32>, vector<16x32xf32>, vector<16x32xf32> -> vector<16x32xf32>
    %cst_20 = arith.constant 0.949999988 : f32
    %32 = vector.broadcast %cst_20 : f32 to vector<16x32xf32>
    %33 = arith.mulf %32, %31 : vector<16x32xf32>
    %34 = arith.addf %30, %33 : vector<16x32xf32>
    %c96 = arith.constant 96 : index
    %c0_21 = arith.constant 0 : index
    %35 = vector.load %arg3[%c96, %c0_21] : memref<160x128xf32, #tpu.memory_space<vmem>>, vector<32x128xf32>
    %cst_22 = arith.constant dense<0.000000e+00> : vector<16x128xf32>
    %36 = tpu.matmul %34, %35, %cst_22 {dimension_numbers = #tpu.dot_dimension_numbers<[1], [0], [0], [1], [0, 0, 1, 1], [], []>} : vector<16x32xf32>, vector<32x128xf32>, vector<16x128xf32> -> vector<16x128xf32>
    %37 = arith.addf %26, %36 : vector<16x128xf32>
    %cst_23 = arith.constant 5.000000e-02 : f32
    %38 = vector.broadcast %cst_23 : f32 to vector<16x32xf32>
    %39 = arith.mulf %38, %3 : vector<16x32xf32>
    %cst_24 = arith.constant dense<0.000000e+00> : vector<16x32xf32>
    %40 = tpu.matmul %28, %34, %cst_24 {dimension_numbers = #tpu.dot_dimension_numbers<[1], [0], [0], [1], [0, 0, 1, 1], [], []>} : vector<16x16xf32>, vector<16x32xf32>, vector<16x32xf32> -> vector<16x32xf32>
    %cst_25 = arith.constant 0.949999988 : f32
    %41 = vector.broadcast %cst_25 : f32 to vector<16x32xf32>
    %42 = arith.mulf %41, %40 : vector<16x32xf32>
    %43 = arith.addf %39, %42 : vector<16x32xf32>
    %c128 = arith.constant 128 : index
    %c0_26 = arith.constant 0 : index
    %44 = vector.load %arg3[%c128, %c0_26] : memref<160x128xf32, #tpu.memory_space<vmem>>, vector<32x128xf32>
    %cst_27 = arith.constant dense<0.000000e+00> : vector<16x128xf32>
    %45 = tpu.matmul %43, %44, %cst_27 {dimension_numbers = #tpu.dot_dimension_numbers<[1], [0], [0], [1], [0, 0, 1, 1], [], []>} : vector<16x32xf32>, vector<32x128xf32>, vector<16x128xf32> -> vector<16x128xf32>
    %46 = arith.addf %37, %45 : vector<16x128xf32>
    %c0_28 = arith.constant 0 : index
    %c0_29 = arith.constant 0 : index
    %47 = vector.load %arg4[%c0_28, %c0_29] : memref<1x128xf32, #tpu.memory_space<vmem>>, vector<1x128xf32>
    %48 = vector.broadcast %47 : vector<1x128xf32> to vector<16x128xf32>
    %49 = arith.addf %46, %48 : vector<16x128xf32>
    %c0_30 = arith.constant 0 : index
    %c0_31 = arith.constant 0 : index
    %c0_32 = arith.constant 0 : index
    %50 = vector.load %arg5[%c0_30, %c0_31, %c0_32] : memref<1x16x128xf32, #tpu.memory_space<vmem>>, vector<1x16x128xf32>
    %51 = vector.shape_cast %50 : vector<1x16x128xf32> to vector<16x128xf32>
    %52 = vector.shape_cast %49 : vector<16x128xf32> to vector<1x16x128xf32>
    tpu.vector_store %arg5[%c0_30, %c0_31, %c0_32], %52 {strides = array<i32>} : memref<1x16x128xf32, #tpu.memory_space<vmem>>, vector<1x16x128xf32>,
    return
  }
  func.func @transform_0(%arg0: i32) -> (i32, i32, i32) {
    %c0_i32 = arith.constant 0 : i32
    %c0_i32_0 = arith.constant 0 : i32
    %c0_i32_1 = arith.constant 0 : i32
    return %arg0, %c0_i32, %c0_i32_0 : i32, i32, i32
  }
  func.func @transform_1(%arg0: i32) -> (i32, i32, i32) {
    %c0_i32 = arith.constant 0 : i32
    %c0_i32_0 = arith.constant 0 : i32
    %c0_i32_1 = arith.constant 0 : i32
    %c0_i32_2 = arith.constant 0 : i32
    return %c0_i32, %c0_i32_0, %c0_i32_1 : i32, i32, i32
  }
  func.func @transform_2(%arg0: i32) -> (i32, i32) {
    %c0_i32 = arith.constant 0 : i32
    %c0_i32_0 = arith.constant 0 : i32
    %c0_i32_1 = arith.constant 0 : i32
    return %c0_i32, %c0_i32_0 : i32, i32
  }
  func.func @transform_3(%arg0: i32) -> (i32, i32) {
    %c0_i32 = arith.constant 0 : i32
    %c0_i32_0 = arith.constant 0 : i32
    %c0_i32_1 = arith.constant 0 : i32
    return %c0_i32, %c0_i32_0 : i32, i32
  }
  func.func @transform_4(%arg0: i32) -> (i32, i32, i32) {
    %c0_i32 = arith.constant 0 : i32
    %c0_i32_0 = arith.constant 0 : i32
    %c0_i32_1 = arith.constant 0 : i32
    return %arg0, %c0_i32, %c0_i32_0 : i32, i32, i32
  }
}

</mosaic_0001>

<llo_original>
// kernel: tpu_custom_call.1
$region0: #{tpu_custom_call.1}
  #allocation0 [shape = 'u32[]', space=smem, size = 0x4, offset = 0x4, fixed_abs, tag = 'smem constant byte address 0x4 - core index']
  #allocation1 [shape = 'u32[144,128]{1,0:T(1,128)}', space=vmem, size = 0x12000, scoped, tag = 'internal scratch']
  %s0 = inlined_call_operand.hbm [shape: f32[2,16,32], index: 0, kind: input, shape index: {}]
  %s1 = inlined_call_operand.hbm [shape: f32[2,16,16], index: 1, kind: input, shape index: {}]
  %s2 = inlined_call_operand.hbm [shape: f32[160,128], index: 2, kind: input, shape index: {}]
  %s3 = inlined_call_operand.vmem [shape: f32[1,128], index: 3, kind: input, shape index: {}]
  %s4 = inlined_call_operand.hbm [shape: f32[2,16,128], index: 4, kind: output, shape index: {}]
  %s5 = sld [smem:[#allocation0]]
  $region61: #{tpu_custom_call.1} parent=0
    _
  %s7 = ssub.s32 1, %s5
  %s8 = scalar_select 0, %s7, %s5
  $region1: #{tpu_custom_call.1} parent=0
    #allocation2 [shape = 'u8[16384]{0}', space=vmem, size = 0x4000, scoped, tag = 'input window, operand 0']
    #allocation3 [shape = 's32[2]{0}', space=sflag, size = 0x8, scoped, tag = 'scoped memory for tpu_custom_call.1']
    #allocation4 [shape = 's32[2]{0}', space=sflag, size = 0x8, scoped, tag = 'scoped memory for tpu_custom_call.1']
    #allocation5 [shape = 'u8[16384]{0}', space=vmem, size = 0x4000, scoped, tag = 'input window, operand 1, single buffered']
    #allocation6 [shape = 's32[1]{0}', space=sflag, size = 0x4, scoped, tag = 'scoped memory for tpu_custom_call.1']
    #allocation7 [shape = 'u8[81920]{0}', space=vmem, size = 0x14000, scoped, tag = 'input window, operand 2, single buffered']
    #allocation8 [shape = 'u8[16384]{0}', space=vmem, size = 0x4000, scoped, tag = 'output window, operand 0']
    %9 = vsyncpa [#allocation3], 0
    %s10 = scalar_lea.sflag [#allocation3], 1
    %11 = vsyncpa %s10, 0
    %12 = vsyncpa [#allocation6], 0
    %13 = vsyncpa [#allocation4], 0
    %s14 = scalar_lea.sflag [#allocation4], 1
    %15 = vsyncpa %s14, 0
    loop: start=0, step=1, limit=4
    $region2: #{tpu_custom_call.1} parent=1 // loop_pre_header
      _
    $region3: #{tpu_custom_call.1} parent=1 // loop_header
      %s17 = sphi 0, %s21
      %p18 = scmp.ge.s32.totalorder %s17, 4
      %s27 = sphi 0, %s29
      %s30 = sphi 0, %s27
      %s31 = sphi 0, %s30
      %s47 = sphi 0, %s31
      %s51 = sphi 0, %s51
      %s53 = sphi 0, %s51
      %s54 = sphi 0, %s53
      %s68 = sphi 0, %s54
      %s72 = sphi 0, %s72
      %s74 = sphi 0, %s72
      %s75 = sphi 0, %s74
      %s89 = sphi 0, %s75
      %s93 = sphi 0, %s93
      %s95 = sphi 0, %s93
      %s96 = sphi 0, %s95
      %s110 = sphi 0, %s96
      %s116 = sphi 0, %s118
      %s119 = sphi 0, %s116
      %s120 = sphi 0, %s119
      %s136 = sphi 0, %s120
    $region4: #{tpu_custom_call.1} parent=1 // loop_header_branch
      %20 = sbr.rel (%p18) target = $region8
    $region5: #{tpu_custom_call.1} parent=1 // loop_body
      %s22 = ssub.s32 %s17, 1
      %s23 = ssub.s32 %s17, 2
      %s24 = sadd.s32 %s17, 1
      %s25 = ssub.s32 %s17, %s24
      %p26 = scmp.eq.s32.totalorder %s25, 0
      %s28 = sadd.s32 %s27, 1
      %s29 = scalar_select %p26, %s27, %s28
      %p32 = pneg %p26
      %p33 = scmp.eq.s32.totalorder %s17, 1
      %p34 = por %p32, %p33
      %p35 = scmp.ne.s32.totalorder %s27, %s30
      %p36 = scmp.eq.s32.totalorder %s17, 0
      %p37 = por %p35, %p36
      %p38 = scmp.ne.s32.totalorder %s27, %s30
      %p39 = scmp.eq.s32.totalorder %s22, 1
      %p40 = por %p38, %p39
      %p41 = scmp.ne.s32.totalorder %s30, %s31
      %p42 = scmp.eq.s32.totalorder %s22, 0
      %p43 = por %p41, %p42
      %p44 = scmp.ne.s32.totalorder %s30, %s31
      %p45 = scmp.eq.s32.totalorder %s23, 1
      %p46 = por %p44, %p45
      %p48 = scmp.ne.s32.totalorder %s31, %s47
      %p49 = scmp.eq.s32.totalorder %s23, 0
      %p50 = por %p48, %p49
      %s52 = sadd.s32 %s51, 1
      %p55 = scmp.eq.s32.totalorder %s17, 1
      %p56 = scmp.ne.s32.totalorder %s51, %s53
      %p57 = scmp.eq.s32.totalorder %s17, 0
      %p58 = por %p56, %p57
      %p59 = scmp.ne.s32.totalorder %s51, %s53
      %p60 = scmp.eq.s32.totalorder %s22, 1
      %p61 = por %p59, %p60
      %p62 = scmp.ne.s32.totalorder %s53, %s54
      %p63 = scmp.eq.s32.totalorder %s22, 0
      %p64 = por %p62, %p63
      %p65 = scmp.ne.s32.totalorder %s53, %s54
      %p66 = scmp.eq.s32.totalorder %s23, 1
      %p67 = por %p65, %p66
      %p69 = scmp.ne.s32.totalorder %s54, %s68
      %p70 = scmp.eq.s32.totalorder %s23, 0
      %p71 = por %p69, %p70
      %s73 = sadd.s32 %s72, 1
      %p76 = scmp.eq.s32.totalorder %s17, 1
      %p77 = scmp.ne.s32.totalorder %s72, %s74
      %p78 = scmp.eq.s32.totalorder %s17, 0
      %p79 = por %p77, %p78
      %p80 = scmp.ne.s32.totalorder %s72, %s74
      %p81 = scmp.eq.s32.totalorder %s22, 1
      %p82 = por %p80, %p81
      %p83 = scmp.ne.s32.totalorder %s74, %s75
      %p84 = scmp.eq.s32.totalorder %s22, 0
      %p85 = por %p83, %p84
      %p86 = scmp.ne.s32.totalorder %s74, %s75
      %p87 = scmp.eq.s32.totalorder %s23, 1
      %p88 = por %p86, %p87
      %p90 = scmp.ne.s32.totalorder %s75, %s89
      %p91 = scmp.eq.s32.totalorder %s23, 0
      %p92 = por %p90, %p91
      %s94 = sadd.s32 %s93, 1
      %p97 = scmp.eq.s32.totalorder %s17, 1
      %p98 = scmp.ne.s32.totalorder %s93, %s95
      %p99 = scmp.eq.s32.totalorder %s17, 0
      %p100 = por %p98, %p99
      %p101 = scmp.ne.s32.totalorder %s93, %s95
      %p102 = scmp.eq.s32.totalorder %s22, 1
      %p103 = por %p101, %p102
      %p104 = scmp.ne.s32.totalorder %s95, %s96
      %p105 = scmp.eq.s32.totalorder %s22, 0
      %p106 = por %p104, %p105
      %p107 = scmp.ne.s32.totalorder %s95, %s96
      %p108 = scmp.eq.s32.totalorder %s23, 1
      %p109 = por %p107, %p108
      %p111 = scmp.ne.s32.totalorder %s96, %s110
      %p112 = scmp.eq.s32.totalorder %s23, 0
      %p113 = por %p111, %p112
      %s114 = ssub.s32 %s17, %s24
      %p115 = scmp.eq.s32.totalorder %s114, 0
      %s117 = sadd.s32 %s116, 1
      %s118 = scalar_select %p115, %s116, %s117
      %p121 = pneg %p115
      %p122 = scmp.eq.s32.totalorder %s17, 1
      %p123 = por %p121, %p122
      %p124 = scmp.ne.s32.totalorder %s116, %s119
      %p125 = scmp.eq.s32.totalorder %s17, 0
      %p126 = por %p124, %p125
      %p127 = scmp.ne.s32.totalorder %s116, %s119
      %p128 = scmp.eq.s32.totalorder %s22, 1
      %p129 = por %p127, %p128
      %p130 = scmp.ne.s32.totalorder %s119, %s120
      %p131 = scmp.eq.s32.totalorder %s22, 0
      %p132 = por %p130, %p131
      %p133 = scmp.ne.s32.totalorder %s119, %s120
      %p134 = scmp.eq.s32.totalorder %s23, 1
      %p135 = por %p133, %p134
      %p137 = scmp.ne.s32.totalorder %s120, %s136
      %p138 = scmp.eq.s32.totalorder %s23, 0
      %p139 = por %p137, %p138
      %p140 = scmp.le.s32.totalorder 1, %s17
      %p141 = scmp.lt.s32.totalorder %s17, 3
      %p142 = pnand %p140, %p141
      %p143 = pneg %p142
      // Predicated region
      $region9: #{tpu_custom_call.1} parent=5 // pred_check
        _
      $region10: #{tpu_custom_call.1} parent=5 // pred_check_branch
        %145 = sbr.rel (%p142) target = $region12
      $region11: #{tpu_custom_call.1} parent=5 // pred_region
        %s146 = ssub.s32 %s17, 1
        // Predicated region
        $region13: #{tpu_custom_call.1} parent=11 // pred_check
          %p147 = pneg %p64
        $region14: #{tpu_custom_call.1} parent=11 // pred_check_branch
          %149 = sbr.rel (%p147) target = $region16
        $region15: #{tpu_custom_call.1} parent=11 // pred_region
          %s151 = ssub.s32 512, 512
          %152 = vsyncadd [#allocation6], %s151
          %s153 = sshll.u32 [#allocation5], 4
          %s154 = int_to_ptr.vmem [resolvable:$true] %s153
          %159 = dma.hbm_to_vmem [thread:$0]  %s1, 512, %s154, [#allocation6], 128, 128, 8
        $region16: #{tpu_custom_call.1} parent=11 // pred_fallthru
          _
        // Predicated region
        $region17: #{tpu_custom_call.1} parent=11 // pred_check
          %p160 = pneg %p85
        $region18: #{tpu_custom_call.1} parent=11 // pred_check_branch
          %162 = sbr.rel (%p160) target = $region20
        $region19: #{tpu_custom_call.1} parent=11 // pred_region
          %s164 = ssub.s32 2560, 2560
          %165 = vsyncadd [#allocation6], %s164
          %s166 = sshll.u32 [#allocation7], 4
          %s167 = int_to_ptr.vmem [resolvable:$true] %s166
          %172 = dma.hbm_to_vmem [thread:$0]  %s2, 2560, %s167, [#allocation6], 128, 128, 8
        $region20: #{tpu_custom_call.1} parent=11 // pred_fallthru
          _
        // Predicated region
        $region21: #{tpu_custom_call.1} parent=11 // pred_check
          %p173 = pneg %p106
        $region22: #{tpu_custom_call.1} parent=11 // pred_check_branch
          %175 = sbr.rel (%p173) target = $region24
        $region23: #{tpu_custom_call.1} parent=11 // pred_region
          _
        $region24: #{tpu_custom_call.1} parent=11 // pred_fallthru
          _
      $region12: #{tpu_custom_call.1} parent=5 // pred_fallthru
        _
      %p176 = scmp.lt.s32.totalorder %s17, 2
      // Predicated region
      $region25: #{tpu_custom_call.1} parent=5 // pred_check
        %p177 = pneg %p176
      $region26: #{tpu_custom_call.1} parent=5 // pred_check_branch
        %179 = sbr.rel (%p177) target = $region28
      $region27: #{tpu_custom_call.1} parent=5 // pred_region
        // Predicated region
        $region29: #{tpu_custom_call.1} parent=27 // pred_check
          %p180 = pneg %p37
        $region30: #{tpu_custom_call.1} parent=27 // pred_check_branch
          %182 = sbr.rel (%p180) target = $region32
        $region31: #{tpu_custom_call.1} parent=27 // pred_region
          %s183 = sand.u32 %s27, 1
          %s184 = scalar_lea.sflag [#allocation3], %s183
          %s185 = sand.u32 %s27, 1
          %s186 = smul.addr %s185, 16
          %s187 = scalar_lea.vmem [#allocation2], %s186
          %s189 = ssub.s32 256, 256
          %190 = vsyncadd %s184, %s189
          %s191 = smul.addr %s17, 2
          %s192 = smul.addr %s191, 128
          %s193 = scalar_lea.hbm %s0, %s192
          %s194 = sshll.u32 %s187, 4
          %s195 = int_to_ptr.vmem [resolvable:$true] %s194
          %200 = dma.hbm_to_vmem [thread:$0]  %s193, 256, %s195, %s184, 128, 128, 8
        $region32: #{tpu_custom_call.1} parent=27 // pred_fallthru
          _
      $region28: #{tpu_custom_call.1} parent=5 // pred_fallthru
        _
      %p201 = scmp.le.s32.totalorder 1, %s17
      %p202 = scmp.lt.s32.totalorder %s17, 3
      %p203 = pnand %p201, %p202
      %p204 = pneg %p203
      // Predicated region
      $region33: #{tpu_custom_call.1} parent=5 // pred_check
        _
      $region34: #{tpu_custom_call.1} parent=5 // pred_check_branch
        %206 = sbr.rel (%p203) target = $region36
      $region35: #{tpu_custom_call.1} parent=5 // pred_region
        %s207 = ssub.s32 %s17, 1
        %s208 = sand.u32 %s30, 1
        %s209 = scalar_lea.sflag [#allocation3], %s208
        %s210 = sand.u32 %s30, 1
        %s211 = smul.addr %s210, 16
        %s212 = scalar_lea.vmem [#allocation2], %s211
        // Predicated region
        $region37: #{tpu_custom_call.1} parent=35 // pred_check
          %p213 = pneg %p43
        $region38: #{tpu_custom_call.1} parent=35 // pred_check_branch
          %215 = sbr.rel (%p213) target = $region40
        $region39: #{tpu_custom_call.1} parent=35 // pred_region
          %216 = dma.done %s209, 256
        $region40: #{tpu_custom_call.1} parent=35 // pred_fallthru
          _
        // Predicated region
        $region41: #{tpu_custom_call.1} parent=35 // pred_check
          %p217 = pneg %p64
        $region42: #{tpu_custom_call.1} parent=35 // pred_check_branch
          %219 = sbr.rel (%p217) target = $region44
        $region43: #{tpu_custom_call.1} parent=35 // pred_region
          %220 = dma.done [#allocation6], 512
        $region44: #{tpu_custom_call.1} parent=35 // pred_fallthru
          _
        // Predicated region
        $region45: #{tpu_custom_call.1} parent=35 // pred_check
          %p221 = pneg %p85
        $region46: #{tpu_custom_call.1} parent=35 // pred_check_branch
          %223 = sbr.rel (%p221) target = $region48
        $region47: #{tpu_custom_call.1} parent=35 // pred_region
          %224 = dma.done [#allocation6], 2560
        $region48: #{tpu_custom_call.1} parent=35 // pred_fallthru
          _
        %s225 = sand.u32 %s30, 1
        %s226 = scalar_lea.sflag [#allocation3], %s225
        %s227 = sand.u32 %s30, 1
        %s228 = smul.addr %s227, 16
        %s229 = scalar_lea.vmem [#allocation2], %s228
        %p230 = pneg %p43
        %p231 = pneg %p40
        %p232 = pneg %p64
        %p233 = pneg %p61
        %p234 = pneg %p85
        %p235 = pneg %p82
        %p236 = pneg %p106
        %p237 = pneg %p103
        %p238 = pneg %p132
        %p239 = pneg %p129
        %s240 = sand.u32 %s119, 1
        %s241 = scalar_lea.sflag [#allocation4], %s240
        %s242 = sand.u32 %s119, 1
        %s243 = smul.addr %s242, 16
        %s244 = scalar_lea.vmem [#allocation8], %s243
        %v245 = vld [vmem:[%s212] sm:$0xff]
        %v246 = vld [vmem:[%s212 + $0x8] sm:$0xff]
        %v247 = vmax.f32 %v245, 0.0
        %v248 = vmax.f32 %v246, 0.0
        %v249 = vld [vmem:[#allocation5] sm:$0xff]
        %v250 = vld [vmem:[#allocation5 + $0x8] sm:$0xff]
        %v251 = vld [vmem:[#allocation5 + $0x10] sm:$0xff]
        %v252 = vld [vmem:[#allocation5 + $0x18] sm:$0xff]
        %v253 = vld [vmem:[#allocation7] sm:$0xff]
        %v254 = vld [vmem:[#allocation7 + $0x8] sm:$0xff]
        %v255 = vld [vmem:[#allocation7 + $0x10] sm:$0xff]
        %v256 = vld [vmem:[#allocation7 + $0x18] sm:$0xff]
        %v257 = vmul.f32 %v247, 0.05
        %v258 = vmul.f32 %v248, 0.05
        %vm259 = vcmask 130048
        %v261 = vsel %vm259, %v249, 0
        %v264 = vsel %vm259, %v250, 0
        %266 = vmatprep.subr.mxu0 0.0
        %267 = vmatpush1.msra.mxu0 0.0
        %268 = vmatprep.subr.mxu0 0.0
        %269 = vmatpush1.msra.mxu0 0.0
        %270 = vmatprep.subr.mxu0 0.0
        %271 = vmatpush1.msra.mxu0 0.0
        %272 = vmatprep.subr.mxu0 0.0
        %273 = vmatpush1.msra.mxu0 0.0
        %274 = vmatprep.subr.mxu0 0.0
        %275 = vmatpush1.msra.mxu0 0.0
        %276 = vmatprep.subr.mxu0 0.0
        %277 = vmatpush1.msra.mxu0 0.0
        %278 = vmatprep.subr.mxu0 0.0
        %279 = vmatpush1.msra.mxu0 0.0
        %280 = vmatprep.subr.mxu0 0.0
        %281 = vmatpush1.msra.mxu0 0.0
        %282 = vmatprep.subr.mxu0 0.0
        %283 = vmatpush1.msra.mxu0 0.0
        %284 = vmatprep.subr.mxu0 0.0
        %285 = vmatpush1.msra.mxu0 0.0
        %286 = vmatprep.subr.mxu0 0.0
        %287 = vmatpush1.msra.mxu0 0.0
        %288 = vmatprep.subr.mxu0 0.0
        %289 = vmatpush1.msra.mxu0 0.0
        %290 = vmatprep.subr.mxu0 0.0
        %291 = vmatpush1.msra.mxu0 0.0
        %292 = vmatprep.subr.mxu0 0.0
        %293 = vmatpush1.msra.mxu0 0.0
        %294 = vmatprep.subr.mxu0 0.0
        %295 = vmatpush1.msra.mxu0 %v248
        %296 = vmatprep.subr.mxu0 0.0
        %297 = vmatpush1.msra.mxu0 %v247
        %298 = vmatprep.subr.mxu0 0.0
        %299 = vmatpush2.msra.mxu0 0.0
        %300 = vmatprep.subr.mxu0 0.0
        %301 = vmatpush2.msra.mxu0 0.0
        %302 = vmatprep.subr.mxu0 0.0
        %303 = vmatpush2.msra.mxu0 0.0
        %304 = vmatprep.subr.mxu0 0.0
        %305 = vmatpush2.msra.mxu0 0.0
        %306 = vmatprep.subr.mxu0 0.0
        %307 = vmatpush2.msra.mxu0 0.0
        %308 = vmatprep.subr.mxu0 0.0
        %309 = vmatpush2.msra.mxu0 0.0
        %310 = vmatprep.subr.mxu0 0.0
        %311 = vmatpush2.msra.mxu0 0.0
        %312 = vmatprep.subr.mxu0 0.0
        %313 = vmatpush2.msra.mxu0 0.0
        %314 = vmatprep.subr.mxu0 0.0
        %315 = vmatpush2.msra.mxu0 0.0
        %316 = vmatprep.subr.mxu0 0.0
        %317 = vmatpush2.msra.mxu0 0.0
        %318 = vmatprep.subr.mxu0 0.0
        %319 = vmatpush2.msra.mxu0 0.0
        %320 = vmatprep.subr.mxu0 0.0
        %321 = vmatpush2.msra.mxu0 0.0
        %322 = vmatprep.subr.mxu0 0.0
        %323 = vmatpush2.msra.mxu0 0.0
        %324 = vmatprep.subr.mxu0 0.0
        %325 = vmatpush2.msra.mxu0 0.0
        %326 = vmatprep.subr.mxu0 0.0
        %327 = vmatpush2.msra.mxu0 0.0
        %328 = vmatprep.subr.mxu0 0.0
        %329 = vmatpush2.msra.mxu0 0.0
        %330 = vmatprep.mubr.f32.mxu0 0.0
        %331 = vmatmul.mubr.f32.gmra.mxu0 %v261
        %v332 = vpop.f32.mrf.mxu0
        %v333 = vadd.f32 0.0, %v332
        %v334 = vpop.f32.mrf.mxu0
        %335 = vmatprep.mubr.f32.mxu0 0.0
        %336 = vmatmul.mubr.f32.gmra.mxu0 %v264
        %v337 = vpop.f32.mrf.mxu0
        %v338 = vadd.f32 0.0, %v337
        %v339 = vpop.f32.mrf.mxu0
        %340 = vdwg.mxu0
        %v341 = vmul.f32 %v333, 0.95
        %v342 = vmul.f32 %v338, 0.95
        %v343 = vadd.f32 %v257, %v341
        %v344 = vadd.f32 %v258, %v342
        %v345 = vld [vmem:[#allocation7 + $0x20] sm:$0xff]
        %v346 = vld [vmem:[#allocation7 + $0x28] sm:$0xff]
        %v347 = vld [vmem:[#allocation7 + $0x30] sm:$0xff]
        %v348 = vld [vmem:[#allocation7 + $0x38] sm:$0xff]
        %vm349 = vcmask 261120
        %v351 = vsel %vm349, %v343, 0
        %v354 = vsel %vm349, %v344, 0
        %356 = vmatprep.subr.mxu0 0.0
        %357 = vmatpush1.msra.mxu0 0.0
        %358 = vmatprep.subr.mxu0 0.0
        %359 = vmatpush1.msra.mxu0 0.0
        %360 = vmatprep.subr.mxu0 0.0
        %361 = vmatpush1.msra.mxu0 0.0
        %362 = vmatprep.subr.mxu0 0.0
        %363 = vmatpush1.msra.mxu0 0.0
        %364 = vmatprep.subr.mxu0 0.0
        %365 = vmatpush1.msra.mxu0 0.0
        %366 = vmatprep.subr.mxu0 0.0
        %367 = vmatpush1.msra.mxu0 0.0
        %368 = vmatprep.subr.mxu0 0.0
        %369 = vmatpush1.msra.mxu0 0.0
        %370 = vmatprep.subr.mxu0 0.0
        %371 = vmatpush1.msra.mxu0 0.0
        %372 = vmatprep.subr.mxu0 0.0
        %373 = vmatpush1.msra.mxu0 0.0
        %374 = vmatprep.subr.mxu0 0.0
        %375 = vmatpush1.msra.mxu0 0.0
        %376 = vmatprep.subr.mxu0 0.0
        %377 = vmatpush1.msra.mxu0 0.0
        %378 = vmatprep.subr.mxu0 0.0
        %379 = vmatpush1.msra.mxu0 0.0
        %380 = vmatprep.subr.mxu0 0.0
        %381 = vmatpush1.msra.mxu0 %v348
        %382 = vmatprep.subr.mxu0 0.0
        %383 = vmatpush1.msra.mxu0 %v347
        %384 = vmatprep.subr.mxu0 0.0
        %385 = vmatpush1.msra.mxu0 %v346
        %386 = vmatprep.subr.mxu0 0.0
        %387 = vmatpush1.msra.mxu0 %v345
        %388 = vmatprep.subr.mxu0 0.0
        %389 = vmatpush2.msra.mxu0 0.0
        %390 = vmatprep.subr.mxu0 0.0
        %391 = vmatpush2.msra.mxu0 0.0
        %392 = vmatprep.subr.mxu0 0.0
        %393 = vmatpush2.msra.mxu0 0.0
        %394 = vmatprep.subr.mxu0 0.0
        %395 = vmatpush2.msra.mxu0 0.0
        %396 = vmatprep.subr.mxu0 0.0
        %397 = vmatpush2.msra.mxu0 0.0
        %398 = vmatprep.subr.mxu0 0.0
        %399 = vmatpush2.msra.mxu0 0.0
        %400 = vmatprep.subr.mxu0 0.0
        %401 = vmatpush2.msra.mxu0 0.0
        %402 = vmatprep.subr.mxu0 0.0
        %403 = vmatpush2.msra.mxu0 0.0
        %404 = vmatprep.subr.mxu0 0.0
        %405 = vmatpush2.msra.mxu0 0.0
        %406 = vmatprep.subr.mxu0 0.0
        %407 = vmatpush2.msra.mxu0 0.0
        %408 = vmatprep.subr.mxu0 0.0
        %409 = vmatpush2.msra.mxu0 0.0
        %410 = vmatprep.subr.mxu0 0.0
        %411 = vmatpush2.msra.mxu0 0.0
        %412 = vmatprep.subr.mxu0 0.0
        %413 = vmatpush2.msra.mxu0 0.0
        %414 = vmatprep.subr.mxu0 0.0
        %415 = vmatpush2.msra.mxu0 0.0
        %416 = vmatprep.subr.mxu0 0.0
        %417 = vmatpush2.msra.mxu0 0.0
        %418 = vmatprep.subr.mxu0 0.0
        %419 = vmatpush2.msra.mxu0 0.0
        %420 = vmatprep.mubr.f32.mxu0 0.0
        %421 = vmatmul.mubr.f32.gmra.mxu0 %v351
        %v422 = vpop.f32.mrf.mxu0
        %v423 = vadd.f32 0.0, %v422
        %v424 = vpop.f32.mrf.mxu0
        %425 = vmatprep.mubr.f32.mxu0 0.0
        %426 = vmatmul.mubr.f32.gmra.mxu0 %v354
        %v427 = vpop.f32.mrf.mxu0
        %v428 = vadd.f32 0.0, %v427
        %v429 = vpop.f32.mrf.mxu0
        %430 = vdwg.mxu0
        %v432 = vsel %vm349, %v247, 0
        %v435 = vsel %vm349, %v248, 0
        %437 = vmatprep.subr.mxu0 0.0
        %438 = vmatpush1.msra.mxu0 0.0
        %439 = vmatprep.subr.mxu0 0.0
        %440 = vmatpush1.msra.mxu0 0.0
        %441 = vmatprep.subr.mxu0 0.0
        %442 = vmatpush1.msra.mxu0 0.0
        %443 = vmatprep.subr.mxu0 0.0
        %444 = vmatpush1.msra.mxu0 0.0
        %445 = vmatprep.subr.mxu0 0.0
        %446 = vmatpush1.msra.mxu0 0.0
        %447 = vmatprep.subr.mxu0 0.0
        %448 = vmatpush1.msra.mxu0 0.0
        %449 = vmatprep.subr.mxu0 0.0
        %450 = vmatpush1.msra.mxu0 0.0
        %451 = vmatprep.subr.mxu0 0.0
        %452 = vmatpush1.msra.mxu0 0.0
        %453 = vmatprep.subr.mxu0 0.0
        %454 = vmatpush1.msra.mxu0 0.0
        %455 = vmatprep.subr.mxu0 0.0
        %456 = vmatpush1.msra.mxu0 0.0
        %457 = vmatprep.subr.mxu0 0.0
        %458 = vmatpush1.msra.mxu0 0.0
        %459 = vmatprep.subr.mxu0 0.0
        %460 = vmatpush1.msra.mxu0 0.0
        %461 = vmatprep.subr.mxu0 0.0
        %462 = vmatpush1.msra.mxu0 %v256
        %463 = vmatprep.subr.mxu0 0.0
        %464 = vmatpush1.msra.mxu0 %v255
        %465 = vmatprep.subr.mxu0 0.0
        %466 = vmatpush1.msra.mxu0 %v254
        %467 = vmatprep.subr.mxu0 0.0
        %468 = vmatpush1.msra.mxu0 %v253
        %469 = vmatprep.subr.mxu0 0.0
        %470 = vmatpush2.msra.mxu0 0.0
        %471 = vmatprep.subr.mxu0 0.0
        %472 = vmatpush2.msra.mxu0 0.0
        %473 = vmatprep.subr.mxu0 0.0
        %474 = vmatpush2.msra.mxu0 0.0
        %475 = vmatprep.subr.mxu0 0.0
        %476 = vmatpush2.msra.mxu0 0.0
        %477 = vmatprep.subr.mxu0 0.0
        %478 = vmatpush2.msra.mxu0 0.0
        %479 = vmatprep.subr.mxu0 0.0
        %480 = vmatpush2.msra.mxu0 0.0
        %481 = vmatprep.subr.mxu0 0.0
        %482 = vmatpush2.msra.mxu0 0.0
        %483 = vmatprep.subr.mxu0 0.0
        %484 = vmatpush2.msra.mxu0 0.0
        %485 = vmatprep.subr.mxu0 0.0
        %486 = vmatpush2.msra.mxu0 0.0
        %487 = vmatprep.subr.mxu0 0.0
        %488 = vmatpush2.msra.mxu0 0.0
        %489 = vmatprep.subr.mxu0 0.0
        %490 = vmatpush2.msra.mxu0 0.0
        %491 = vmatprep.subr.mxu0 0.0
        %492 = vmatpush2.msra.mxu0 0.0
        %493 = vmatprep.subr.mxu0 0.0
        %494 = vmatpush2.msra.mxu0 0.0
        %495 = vmatprep.subr.mxu0 0.0
        %496 = vmatpush2.msra.mxu0 0.0
        %497 = vmatprep.subr.mxu0 0.0
        %498 = vmatpush2.msra.mxu0 0.0
        %499 = vmatprep.subr.mxu0 0.0
        %500 = vmatpush2.msra.mxu0 0.0
        %501 = vmatprep.mubr.f32.mxu0 0.0
        %502 = vmatmul.mubr.f32.gmra.mxu0 %v432
        %v503 = vpop.f32.mrf.mxu0
        %v504 = vadd.f32 %v423, %v503
        %v505 = vpop.f32.mrf.mxu0
        %506 = vmatprep.mubr.f32.mxu0 0.0
        %507 = vmatmul.mubr.f32.gmra.mxu0 %v435
        %v508 = vpop.f32.mrf.mxu0
        %v509 = vadd.f32 %v428, %v508
        %v510 = vpop.f32.mrf.mxu0
        %511 = vdwg.mxu0
        %512 = vmatprep.subr.mxu0 0.0
        %513 = vmatpush1.msra.mxu0 0.0
        %514 = vmatprep.subr.mxu0 0.0
        %515 = vmatpush1.msra.mxu0 0.0
        %516 = vmatprep.subr.mxu0 0.0
        %517 = vmatpush1.msra.mxu0 0.0
        %518 = vmatprep.subr.mxu0 0.0
        %519 = vmatpush1.msra.mxu0 0.0
        %520 = vmatprep.subr.mxu0 0.0
        %521 = vmatpush1.msra.mxu0 0.0
        %522 = vmatprep.subr.mxu0 0.0
        %523 = vmatpush1.msra.mxu0 0.0
        %524 = vmatprep.subr.mxu0 0.0
        %525 = vmatpush1.msra.mxu0 0.0
        %526 = vmatprep.subr.mxu0 0.0
        %527 = vmatpush1.msra.mxu0 0.0
        %528 = vmatprep.subr.mxu0 0.0
        %529 = vmatpush1.msra.mxu0 0.0
        %530 = vmatprep.subr.mxu0 0.0
        %531 = vmatpush1.msra.mxu0 0.0
        %532 = vmatprep.subr.mxu0 0.0
        %533 = vmatpush1.msra.mxu0 0.0
        %534 = vmatprep.subr.mxu0 0.0
        %535 = vmatpush1.msra.mxu0 0.0
        %536 = vmatprep.subr.mxu0 0.0
        %537 = vmatpush1.msra.mxu0 0.0
        %538 = vmatprep.subr.mxu0 0.0
        %539 = vmatpush1.msra.mxu0 0.0
        %540 = vmatprep.subr.mxu0 0.0
        %541 = vmatpush1.msra.mxu0 %v344
        %542 = vmatprep.subr.mxu0 0.0
        %543 = vmatpush1.msra.mxu0 %v343
        %544 = vmatprep.subr.mxu0 0.0
        %545 = vmatpush2.msra.mxu0 0.0
        %546 = vmatprep.subr.mxu0 0.0
        %547 = vmatpush2.msra.mxu0 0.0
        %548 = vmatprep.subr.mxu0 0.0
        %549 = vmatpush2.msra.mxu0 0.0
        %550 = vmatprep.subr.mxu0 0.0
        %551 = vmatpush2.msra.mxu0 0.0
        %552 = vmatprep.subr.mxu0 0.0
        %553 = vmatpush2.msra.mxu0 0.0
        %554 = vmatprep.subr.mxu0 0.0
        %555 = vmatpush2.msra.mxu0 0.0
        %556 = vmatprep.subr.mxu0 0.0
        %557 = vmatpush2.msra.mxu0 0.0
        %558 = vmatprep.subr.mxu0 0.0
        %559 = vmatpush2.msra.mxu0 0.0
        %560 = vmatprep.subr.mxu0 0.0
        %561 = vmatpush2.msra.mxu0 0.0
        %562 = vmatprep.subr.mxu0 0.0
        %563 = vmatpush2.msra.mxu0 0.0
        %564 = vmatprep.subr.mxu0 0.0
        %565 = vmatpush2.msra.mxu0 0.0
        %566 = vmatprep.subr.mxu0 0.0
        %567 = vmatpush2.msra.mxu0 0.0
        %568 = vmatprep.subr.mxu0 0.0
        %569 = vmatpush2.msra.mxu0 0.0
        %570 = vmatprep.subr.mxu0 0.0
        %571 = vmatpush2.msra.mxu0 0.0
        %572 = vmatprep.subr.mxu0 0.0
        %573 = vmatpush2.msra.mxu0 0.0
        %574 = vmatprep.subr.mxu0 0.0
        %575 = vmatpush2.msra.mxu0 0.0
        %576 = vmatprep.mubr.f32.mxu0 0.0
        %577 = vmatmul.mubr.f32.gmra.mxu0 %v261
        %v578 = vpop.f32.mrf.mxu0
        %v579 = vadd.f32 0.0, %v578
        %v580 = vpop.f32.mrf.mxu0
        %581 = vmatprep.mubr.f32.mxu0 0.0
        %582 = vmatmul.mubr.f32.gmra.mxu0 %v264
        %v583 = vpop.f32.mrf.mxu0
        %v584 = vadd.f32 0.0, %v583
        %v585 = vpop.f32.mrf.mxu0
        %586 = vdwg.mxu0
        %v587 = vmul.f32 %v579, 0.95
        %v588 = vmul.f32 %v584, 0.95
        %v589 = vadd.f32 %v257, %v587
        %v590 = vadd.f32 %v258, %v588
        %v591 = vld [vmem:[#allocation7 + $0x40] sm:$0xff]
        %v592 = vld [vmem:[#allocation7 + $0x48] sm:$0xff]
        %v593 = vld [vmem:[#allocation7 + $0x50] sm:$0xff]
        %v594 = vld [vmem:[#allocation7 + $0x58] sm:$0xff]
        %v596 = vsel %vm349, %v589, 0
        %v599 = vsel %vm349, %v590, 0
        %601 = vmatprep.subr.mxu0 0.0
        %602 = vmatpush1.msra.mxu0 0.0
        %603 = vmatprep.subr.mxu0 0.0
        %604 = vmatpush1.msra.mxu0 0.0
        %605 = vmatprep.subr.mxu0 0.0
        %606 = vmatpush1.msra.mxu0 0.0
        %607 = vmatprep.subr.mxu0 0.0
        %608 = vmatpush1.msra.mxu0 0.0
        %609 = vmatprep.subr.mxu0 0.0
        %610 = vmatpush1.msra.mxu0 0.0
        %611 = vmatprep.subr.mxu0 0.0
        %612 = vmatpush1.msra.mxu0 0.0
        %613 = vmatprep.subr.mxu0 0.0
        %614 = vmatpush1.msra.mxu0 0.0
        %615 = vmatprep.subr.mxu0 0.0
        %616 = vmatpush1.msra.mxu0 0.0
        %617 = vmatprep.subr.mxu0 0.0
        %618 = vmatpush1.msra.mxu0 0.0
        %619 = vmatprep.subr.mxu0 0.0
        %620 = vmatpush1.msra.mxu0 0.0
        %621 = vmatprep.subr.mxu0 0.0
        %622 = vmatpush1.msra.mxu0 0.0
        %623 = vmatprep.subr.mxu0 0.0
        %624 = vmatpush1.msra.mxu0 0.0
        %625 = vmatprep.subr.mxu0 0.0
        %626 = vmatpush1.msra.mxu0 %v594
        %627 = vmatprep.subr.mxu0 0.0
        %628 = vmatpush1.msra.mxu0 %v593
        %629 = vmatprep.subr.mxu0 0.0
        %630 = vmatpush1.msra.mxu0 %v592
        %631 = vmatprep.subr.mxu0 0.0
        %632 = vmatpush1.msra.mxu0 %v591
        %633 = vmatprep.subr.mxu0 0.0
        %634 = vmatpush2.msra.mxu0 0.0
        %635 = vmatprep.subr.mxu0 0.0
        %636 = vmatpush2.msra.mxu0 0.0
        %637 = vmatprep.subr.mxu0 0.0
        %638 = vmatpush2.msra.mxu0 0.0
        %639 = vmatprep.subr.mxu0 0.0
        %640 = vmatpush2.msra.mxu0 0.0
        %641 = vmatprep.subr.mxu0 0.0
        %642 = vmatpush2.msra.mxu0 0.0
        %643 = vmatprep.subr.mxu0 0.0
        %644 = vmatpush2.msra.mxu0 0.0
        %645 = vmatprep.subr.mxu0 0.0
        %646 = vmatpush2.msra.mxu0 0.0
        %647 = vmatprep.subr.mxu0 0.0
        %648 = vmatpush2.msra.mxu0 0.0
        %649 = vmatprep.subr.mxu0 0.0
        %650 = vmatpush2.msra.mxu0 0.0
        %651 = vmatprep.subr.mxu0 0.0
        %652 = vmatpush2.msra.mxu0 0.0
        %653 = vmatprep.subr.mxu0 0.0
        %654 = vmatpush2.msra.mxu0 0.0
        %655 = vmatprep.subr.mxu0 0.0
        %656 = vmatpush2.msra.mxu0 0.0
        %657 = vmatprep.subr.mxu0 0.0
        %658 = vmatpush2.msra.mxu0 0.0
        %659 = vmatprep.subr.mxu0 0.0
        %660 = vmatpush2.msra.mxu0 0.0
        %661 = vmatprep.subr.mxu0 0.0
        %662 = vmatpush2.msra.mxu0 0.0
        %663 = vmatprep.subr.mxu0 0.0
        %664 = vmatpush2.msra.mxu0 0.0
        %665 = vmatprep.mubr.f32.mxu0 0.0
        %666 = vmatmul.mubr.f32.gmra.mxu0 %v596
        %v667 = vpop.f32.mrf.mxu0
        %v668 = vadd.f32 0.0, %v667
        %v669 = vpop.f32.mrf.mxu0
        %670 = vmatprep.mubr.f32.mxu0 0.0
        %671 = vmatmul.mubr.f32.gmra.mxu0 %v599
        %v672 = vpop.f32.mrf.mxu0
        %v673 = vadd.f32 0.0, %v672
        %v674 = vpop.f32.mrf.mxu0
        %675 = vdwg.mxu0
        %v676 = vadd.f32 %v504, %v668
        %v677 = vadd.f32 %v509, %v673
        %v679 = vsel %vm259, %v251, 0
        %v682 = vsel %vm259, %v252, 0
        %684 = vmatprep.subr.mxu0 0.0
        %685 = vmatpush1.msra.mxu0 0.0
        %686 = vmatprep.subr.mxu0 0.0
        %687 = vmatpush1.msra.mxu0 0.0
        %688 = vmatprep.subr.mxu0 0.0
        %689 = vmatpush1.msra.mxu0 0.0
        %690 = vmatprep.subr.mxu0 0.0
        %691 = vmatpush1.msra.mxu0 0.0
        %692 = vmatprep.subr.mxu0 0.0
        %693 = vmatpush1.msra.mxu0 0.0
        %694 = vmatprep.subr.mxu0 0.0
        %695 = vmatpush1.msra.mxu0 0.0
        %696 = vmatprep.subr.mxu0 0.0
        %697 = vmatpush1.msra.mxu0 0.0
        %698 = vmatprep.subr.mxu0 0.0
        %699 = vmatpush1.msra.mxu0 0.0
        %700 = vmatprep.subr.mxu0 0.0
        %701 = vmatpush1.msra.mxu0 0.0
        %702 = vmatprep.subr.mxu0 0.0
        %703 = vmatpush1.msra.mxu0 0.0
        %704 = vmatprep.subr.mxu0 0.0
        %705 = vmatpush1.msra.mxu0 0.0
        %706 = vmatprep.subr.mxu0 0.0
        %707 = vmatpush1.msra.mxu0 0.0
        %708 = vmatprep.subr.mxu0 0.0
        %709 = vmatpush1.msra.mxu0 0.0
        %710 = vmatprep.subr.mxu0 0.0
        %711 = vmatpush1.msra.mxu0 0.0
        %712 = vmatprep.subr.mxu0 0.0
        %713 = vmatpush1.msra.mxu0 %v248
        %714 = vmatprep.subr.mxu0 0.0
        %715 = vmatpush1.msra.mxu0 %v247
        %716 = vmatprep.subr.mxu0 0.0
        %717 = vmatpush2.msra.mxu0 0.0
        %718 = vmatprep.subr.mxu0 0.0
        %719 = vmatpush2.msra.mxu0 0.0
        %720 = vmatprep.subr.mxu0 0.0
        %721 = vmatpush2.msra.mxu0 0.0
        %722 = vmatprep.subr.mxu0 0.0
        %723 = vmatpush2.msra.mxu0 0.0
        %724 = vmatprep.subr.mxu0 0.0
        %725 = vmatpush2.msra.mxu0 0.0
        %726 = vmatprep.subr.mxu0 0.0
        %727 = vmatpush2.msra.mxu0 0.0
        %728 = vmatprep.subr.mxu0 0.0
        %729 = vmatpush2.msra.mxu0 0.0
        %730 = vmatprep.subr.mxu0 0.0
        %731 = vmatpush2.msra.mxu0 0.0
        %732 = vmatprep.subr.mxu0 0.0
        %733 = vmatpush2.msra.mxu0 0.0
        %734 = vmatprep.subr.mxu0 0.0
        %735 = vmatpush2.msra.mxu0 0.0
        %736 = vmatprep.subr.mxu0 0.0
        %737 = vmatpush2.msra.mxu0 0.0
        %738 = vmatprep.subr.mxu0 0.0
        %739 = vmatpush2.msra.mxu0 0.0
        %740 = vmatprep.subr.mxu0 0.0
        %741 = vmatpush2.msra.mxu0 0.0
        %742 = vmatprep.subr.mxu0 0.0
        %743 = vmatpush2.msra.mxu0 0.0
        %744 = vmatprep.subr.mxu0 0.0
        %745 = vmatpush2.msra.mxu0 0.0
        %746 = vmatprep.subr.mxu0 0.0
        %747 = vmatpush2.msra.mxu0 0.0
        %748 = vmatprep.mubr.f32.mxu0 0.0
        %749 = vmatmul.mubr.f32.gmra.mxu0 %v679
        %v750 = vpop.f32.mrf.mxu0
        %v751 = vadd.f32 0.0, %v750
        %v752 = vpop.f32.mrf.mxu0
        %753 = vmatprep.mubr.f32.mxu0 0.0
        %754 = vmatmul.mubr.f32.gmra.mxu0 %v682
        %v755 = vpop.f32.mrf.mxu0
        %v756 = vadd.f32 0.0, %v755
        %v757 = vpop.f32.mrf.mxu0
        %758 = vdwg.mxu0
        %v759 = vmul.f32 %v751, 0.95
        %v760 = vmul.f32 %v756, 0.95
        %v761 = vadd.f32 %v257, %v759
        %v762 = vadd.f32 %v258, %v760
        %v763 = vld [vmem:[#allocation7 + $0x60] sm:$0xff]
        %v764 = vld [vmem:[#allocation7 + $0x68] sm:$0xff]
        %v765 = vld [vmem:[#allocation7 + $0x70] sm:$0xff]
        %v766 = vld [vmem:[#allocation7 + $0x78] sm:$0xff]
        %v768 = vsel %vm349, %v761, 0
        %v771 = vsel %vm349, %v762, 0
        %773 = vmatprep.subr.mxu0 0.0
        %774 = vmatpush1.msra.mxu0 0.0
        %775 = vmatprep.subr.mxu0 0.0
        %776 = vmatpush1.msra.mxu0 0.0
        %777 = vmatprep.subr.mxu0 0.0
        %778 = vmatpush1.msra.mxu0 0.0
        %779 = vmatprep.subr.mxu0 0.0
        %780 = vmatpush1.msra.mxu0 0.0
        %781 = vmatprep.subr.mxu0 0.0
        %782 = vmatpush1.msra.mxu0 0.0
        %783 = vmatprep.subr.mxu0 0.0
        %784 = vmatpush1.msra.mxu0 0.0
        %785 = vmatprep.subr.mxu0 0.0
        %786 = vmatpush1.msra.mxu0 0.0
        %787 = vmatprep.subr.mxu0 0.0
        %788 = vmatpush1.msra.mxu0 0.0
        %789 = vmatprep.subr.mxu0 0.0
        %790 = vmatpush1.msra.mxu0 0.0
        %791 = vmatprep.subr.mxu0 0.0
        %792 = vmatpush1.msra.mxu0 0.0
        %793 = vmatprep.subr.mxu0 0.0
        %794 = vmatpush1.msra.mxu0 0.0
        %795 = vmatprep.subr.mxu0 0.0
        %796 = vmatpush1.msra.mxu0 0.0
        %797 = vmatprep.subr.mxu0 0.0
        %798 = vmatpush1.msra.mxu0 %v766
        %799 = vmatprep.subr.mxu0 0.0
        %800 = vmatpush1.msra.mxu0 %v765
        %801 = vmatprep.subr.mxu0 0.0
        %802 = vmatpush1.msra.mxu0 %v764
        %803 = vmatprep.subr.mxu0 0.0
        %804 = vmatpush1.msra.mxu0 %v763
        %805 = vmatprep.subr.mxu0 0.0
        %806 = vmatpush2.msra.mxu0 0.0
        %807 = vmatprep.subr.mxu0 0.0
        %808 = vmatpush2.msra.mxu0 0.0
        %809 = vmatprep.subr.mxu0 0.0
        %810 = vmatpush2.msra.mxu0 0.0
        %811 = vmatprep.subr.mxu0 0.0
        %812 = vmatpush2.msra.mxu0 0.0
        %813 = vmatprep.subr.mxu0 0.0
        %814 = vmatpush2.msra.mxu0 0.0
        %815 = vmatprep.subr.mxu0 0.0
        %816 = vmatpush2.msra.mxu0 0.0
        %817 = vmatprep.subr.mxu0 0.0
        %818 = vmatpush2.msra.mxu0 0.0
        %819 = vmatprep.subr.mxu0 0.0
        %820 = vmatpush2.msra.mxu0 0.0
        %821 = vmatprep.subr.mxu0 0.0
        %822 = vmatpush2.msra.mxu0 0.0
        %823 = vmatprep.subr.mxu0 0.0
        %824 = vmatpush2.msra.mxu0 0.0
        %825 = vmatprep.subr.mxu0 0.0
        %826 = vmatpush2.msra.mxu0 0.0
        %827 = vmatprep.subr.mxu0 0.0
        %828 = vmatpush2.msra.mxu0 0.0
        %829 = vmatprep.subr.mxu0 0.0
        %830 = vmatpush2.msra.mxu0 0.0
        %831 = vmatprep.subr.mxu0 0.0
        %832 = vmatpush2.msra.mxu0 0.0
        %833 = vmatprep.subr.mxu0 0.0
        %834 = vmatpush2.msra.mxu0 0.0
        %835 = vmatprep.subr.mxu0 0.0
        %836 = vmatpush2.msra.mxu0 0.0
        %837 = vmatprep.mubr.f32.mxu0 0.0
        %838 = vmatmul.mubr.f32.gmra.mxu0 %v768
        %v839 = vpop.f32.mrf.mxu0
        %v840 = vadd.f32 0.0, %v839
        %v841 = vpop.f32.mrf.mxu0
        %842 = vmatprep.mubr.f32.mxu0 0.0
        %843 = vmatmul.mubr.f32.gmra.mxu0 %v771
        %v844 = vpop.f32.mrf.mxu0
        %v845 = vadd.f32 0.0, %v844
        %v846 = vpop.f32.mrf.mxu0
        %847 = vdwg.mxu0
        %v848 = vadd.f32 %v676, %v840
        %v849 = vadd.f32 %v677, %v845
        %850 = vmatprep.subr.mxu0 0.0
        %851 = vmatpush1.msra.mxu0 0.0
        %852 = vmatprep.subr.mxu0 0.0
        %853 = vmatpush1.msra.mxu0 0.0
        %854 = vmatprep.subr.mxu0 0.0
        %855 = vmatpush1.msra.mxu0 0.0
        %856 = vmatprep.subr.mxu0 0.0
        %857 = vmatpush1.msra.mxu0 0.0
        %858 = vmatprep.subr.mxu0 0.0
        %859 = vmatpush1.msra.mxu0 0.0
        %860 = vmatprep.subr.mxu0 0.0
        %861 = vmatpush1.msra.mxu0 0.0
        %862 = vmatprep.subr.mxu0 0.0
        %863 = vmatpush1.msra.mxu0 0.0
        %864 = vmatprep.subr.mxu0 0.0
        %865 = vmatpush1.msra.mxu0 0.0
        %866 = vmatprep.subr.mxu0 0.0
        %867 = vmatpush1.msra.mxu0 0.0
        %868 = vmatprep.subr.mxu0 0.0
        %869 = vmatpush1.msra.mxu0 0.0
        %870 = vmatprep.subr.mxu0 0.0
        %871 = vmatpush1.msra.mxu0 0.0
        %872 = vmatprep.subr.mxu0 0.0
        %873 = vmatpush1.msra.mxu0 0.0
        %874 = vmatprep.subr.mxu0 0.0
        %875 = vmatpush1.msra.mxu0 0.0
        %876 = vmatprep.subr.mxu0 0.0
        %877 = vmatpush1.msra.mxu0 0.0
        %878 = vmatprep.subr.mxu0 0.0
        %879 = vmatpush1.msra.mxu0 %v762
        %880 = vmatprep.subr.mxu0 0.0
        %881 = vmatpush1.msra.mxu0 %v761
        %882 = vmatprep.subr.mxu0 0.0
        %883 = vmatpush2.msra.mxu0 0.0
        %884 = vmatprep.subr.mxu0 0.0
        %885 = vmatpush2.msra.mxu0 0.0
        %886 = vmatprep.subr.mxu0 0.0
        %887 = vmatpush2.msra.mxu0 0.0
        %888 = vmatprep.subr.mxu0 0.0
        %889 = vmatpush2.msra.mxu0 0.0
        %890 = vmatprep.subr.mxu0 0.0
        %891 = vmatpush2.msra.mxu0 0.0
        %892 = vmatprep.subr.mxu0 0.0
        %893 = vmatpush2.msra.mxu0 0.0
        %894 = vmatprep.subr.mxu0 0.0
        %895 = vmatpush2.msra.mxu0 0.0
        %896 = vmatprep.subr.mxu0 0.0
        %897 = vmatpush2.msra.mxu0 0.0
        %898 = vmatprep.subr.mxu0 0.0
        %899 = vmatpush2.msra.mxu0 0.0
        %900 = vmatprep.subr.mxu0 0.0
        %901 = vmatpush2.msra.mxu0 0.0
        %902 = vmatprep.subr.mxu0 0.0
        %903 = vmatpush2.msra.mxu0 0.0
        %904 = vmatprep.subr.mxu0 0.0
        %905 = vmatpush2.msra.mxu0 0.0
        %906 = vmatprep.subr.mxu0 0.0
        %907 = vmatpush2.msra.mxu0 0.0
        %908 = vmatprep.subr.mxu0 0.0
        %909 = vmatpush2.msra.mxu0 0.0
        %910 = vmatprep.subr.mxu0 0.0
        %911 = vmatpush2.msra.mxu0 0.0
        %912 = vmatprep.subr.mxu0 0.0
        %913 = vmatpush2.msra.mxu0 0.0
        %914 = vmatprep.mubr.f32.mxu0 0.0
        %915 = vmatmul.mubr.f32.gmra.mxu0 %v679
        %v916 = vpop.f32.mrf.mxu0
        %v917 = vadd.f32 0.0, %v916
        %v918 = vpop.f32.mrf.mxu0
        %919 = vmatprep.mubr.f32.mxu0 0.0
        %920 = vmatmul.mubr.f32.gmra.mxu0 %v682
        %v921 = vpop.f32.mrf.mxu0
        %v922 = vadd.f32 0.0, %v921
        %v923 = vpop.f32.mrf.mxu0
        %924 = vdwg.mxu0
        %v925 = vmul.f32 %v917, 0.95
        %v926 = vmul.f32 %v922, 0.95
        %v927 = vadd.f32 %v257, %v925
        %v928 = vadd.f32 %v258, %v926
        %v929 = vld [vmem:[#allocation7 + $0x80] sm:$0xff]
        %v930 = vld [vmem:[#allocation7 + $0x88] sm:$0xff]
        %v931 = vld [vmem:[#allocation7 + $0x90] sm:$0xff]
        %v932 = vld [vmem:[#allocation7 + $0x98] sm:$0xff]
        %v934 = vsel %vm349, %v927, 0
        %v937 = vsel %vm349, %v928, 0
        %939 = vmatprep.subr.mxu0 0.0
        %940 = vmatpush1.msra.mxu0 0.0
        %941 = vmatprep.subr.mxu0 0.0
        %942 = vmatpush1.msra.mxu0 0.0
        %943 = vmatprep.subr.mxu0 0.0
        %944 = vmatpush1.msra.mxu0 0.0
        %945 = vmatprep.subr.mxu0 0.0
        %946 = vmatpush1.msra.mxu0 0.0
        %947 = vmatprep.subr.mxu0 0.0
        %948 = vmatpush1.msra.mxu0 0.0
        %949 = vmatprep.subr.mxu0 0.0
        %950 = vmatpush1.msra.mxu0 0.0
        %951 = vmatprep.subr.mxu0 0.0
        %952 = vmatpush1.msra.mxu0 0.0
        %953 = vmatprep.subr.mxu0 0.0
        %954 = vmatpush1.msra.mxu0 0.0
        %955 = vmatprep.subr.mxu0 0.0
        %956 = vmatpush1.msra.mxu0 0.0
        %957 = vmatprep.subr.mxu0 0.0
        %958 = vmatpush1.msra.mxu0 0.0
        %959 = vmatprep.subr.mxu0 0.0
        %960 = vmatpush1.msra.mxu0 0.0
        %961 = vmatprep.subr.mxu0 0.0
        %962 = vmatpush1.msra.mxu0 0.0
        %963 = vmatprep.subr.mxu0 0.0
        %964 = vmatpush1.msra.mxu0 %v932
        %965 = vmatprep.subr.mxu0 0.0
        %966 = vmatpush1.msra.mxu0 %v931
        %967 = vmatprep.subr.mxu0 0.0
        %968 = vmatpush1.msra.mxu0 %v930
        %969 = vmatprep.subr.mxu0 0.0
        %970 = vmatpush1.msra.mxu0 %v929
        %971 = vmatprep.subr.mxu0 0.0
        %972 = vmatpush2.msra.mxu0 0.0
        %973 = vmatprep.subr.mxu0 0.0
        %974 = vmatpush2.msra.mxu0 0.0
        %975 = vmatprep.subr.mxu0 0.0
        %976 = vmatpush2.msra.mxu0 0.0
        %977 = vmatprep.subr.mxu0 0.0
        %978 = vmatpush2.msra.mxu0 0.0
        %979 = vmatprep.subr.mxu0 0.0
        %980 = vmatpush2.msra.mxu0 0.0
        %981 = vmatprep.subr.mxu0 0.0
        %982 = vmatpush2.msra.mxu0 0.0
        %983 = vmatprep.subr.mxu0 0.0
        %984 = vmatpush2.msra.mxu0 0.0
        %985 = vmatprep.subr.mxu0 0.0
        %986 = vmatpush2.msra.mxu0 0.0
        %987 = vmatprep.subr.mxu0 0.0
        %988 = vmatpush2.msra.mxu0 0.0
        %989 = vmatprep.subr.mxu0 0.0
        %990 = vmatpush2.msra.mxu0 0.0
        %991 = vmatprep.subr.mxu0 0.0
        %992 = vmatpush2.msra.mxu0 0.0
        %993 = vmatprep.subr.mxu0 0.0
        %994 = vmatpush2.msra.mxu0 0.0
        %995 = vmatprep.subr.mxu0 0.0
        %996 = vmatpush2.msra.mxu0 0.0
        %997 = vmatprep.subr.mxu0 0.0
        %998 = vmatpush2.msra.mxu0 0.0
        %999 = vmatprep.subr.mxu0 0.0
        %1000 = vmatpush2.msra.mxu0 0.0
        %1001 = vmatprep.subr.mxu0 0.0
        %1002 = vmatpush2.msra.mxu0 0.0
        %1003 = vmatprep.mubr.f32.mxu0 0.0
        %1004 = vmatmul.mubr.f32.gmra.mxu0 %v934
        %v1005 = vpop.f32.mrf.mxu0
        %v1006 = vadd.f32 0.0, %v1005
        %v1007 = vpop.f32.mrf.mxu0
        %1008 = vmatprep.mubr.f32.mxu0 0.0
        %1009 = vmatmul.mubr.f32.gmra.mxu0 %v937
        %v1010 = vpop.f32.mrf.mxu0
        %v1011 = vadd.f32 0.0, %v1010
        %v1012 = vpop.f32.mrf.mxu0
        %1013 = vdwg.mxu0
        %v1014 = vadd.f32 %v848, %v1006
        %v1015 = vadd.f32 %v849, %v1011
        %v1016 = vld [vmem:[%s3] sm:$0x1]
        %v1018 = vlaneseq
        %v1019 = vshrl.u32 %v1018, 7
        %v1020 = vsub.s32 0, %v1019
        %v1021 = vrot.slane %v1016, %v1020
        %v1023 = vadd.f32 %v1014, %v1021
        %v1024 = vadd.f32 %v1015, %v1021
        %1025 = vst [vmem:[%s244] sm:$0xff] %v1023
        %1026 = vst [vmem:[%s244 + $0x8] sm:$0xff] %v1024
        %s1027 = sand.u32 %s119, 1
        %s1028 = scalar_lea.sflag [#allocation4], %s1027
        %s1029 = sand.u32 %s119, 1
        %s1030 = smul.addr %s1029, 16
        %s1031 = scalar_lea.vmem [#allocation8], %s1030
        // Predicated region
        $region49: #{tpu_custom_call.1} parent=35 // pred_check
          %p1032 = pneg %p129
        $region50: #{tpu_custom_call.1} parent=35 // pred_check_branch
          %1034 = sbr.rel (%p1032) target = $region52
        $region51: #{tpu_custom_call.1} parent=35 // pred_region
          %s1036 = ssub.s32 256, 256
          %1037 = vsyncadd %s1028, %s1036
          %s1038 = smul.addr %s22, 2
          %s1039 = smul.addr %s1038, 128
          %s1040 = scalar_lea.hbm %s4, %s1039
          %s1041 = sshll.u32 %s1031, 4
          %s1042 = int_to_ptr.vmem [resolvable:$true] %s1041
          %1047 = dma.vmem_to_hbm [thread:$0]  %s1042, 256, %s1040, %s1028, 128, 128, 8
        $region52: #{tpu_custom_call.1} parent=35 // pred_fallthru
          _
      $region36: #{tpu_custom_call.1} parent=5 // pred_fallthru
        _
      %p1048 = scmp.le.s32.totalorder 2, %s17
      // Predicated region
      $region53: #{tpu_custom_call.1} parent=5 // pred_check
        %p1049 = pneg %p1048
      $region54: #{tpu_custom_call.1} parent=5 // pred_check_branch
        %1051 = sbr.rel (%p1049) target = $region56
      $region55: #{tpu_custom_call.1} parent=5 // pred_region
        %s1052 = ssub.s32 %s17, 2
        // Predicated region
        $region57: #{tpu_custom_call.1} parent=55 // pred_check
          %p1053 = pneg %p135
        $region58: #{tpu_custom_call.1} parent=55 // pred_check_branch
          %1055 = sbr.rel (%p1053) target = $region60
        $region59: #{tpu_custom_call.1} parent=55 // pred_region
          %s1056 = sand.u32 %s120, 1
          %s1057 = scalar_lea.sflag [#allocation4], %s1056
          %s1058 = sand.u32 %s120, 1
          %s1059 = smul.addr %s1058, 16
          %s1060 = scalar_lea.vmem [#allocation8], %s1059
          %1061 = dma.done %s1057, 256
        $region60: #{tpu_custom_call.1} parent=55 // pred_fallthru
          _
      $region56: #{tpu_custom_call.1} parent=5 // pred_fallthru
        _
    $region6: #{tpu_custom_call.1} parent=1 // loop_footer
      %s21 = sadd.s32 1, %s17
    $region7: #{tpu_custom_call.1} parent=1 // loop_footer_branch
      %16 = sbr.rel target = $region3
    $region8: #{tpu_custom_call.1} parent=1 // loop_exit
      _
    %1062 = vsyncpa [#allocation3], 1
    %s1063 = scalar_lea.sflag [#allocation3], 1
    %1064 = vsyncpa %s1063, 1
    %1065 = vsyncpa [#allocation6], 1
    %1066 = vsyncpa [#allocation4], 1
    %s1067 = scalar_lea.sflag [#allocation4], 1
    %1068 = vsyncpa %s1067, 1

</llo_original>
